<compile_context>
chip_gen: v7x
topology: tpu7x:2x2x1
jax: 0.10.0
libtpu: 0.0.40
codegen_flags: <defaults>
</compile_context>

<pallas_src>
import numpy as np
import jax
import jax.numpy as jnp
from jax.experimental import pallas as pl
from jax.experimental.pallas import tpu as pltpu


def _round_up(x: int, m: int) -> int:
    return ((x + m - 1) // m) * m


# ----------------------------------------------------------------------------
# Pallas kernel: one lane tile (TE hyperedges) of fully fused scores.
# ----------------------------------------------------------------------------
def _selector_kernel(membT_ref, invc_ref, aT_ref, b1T_ref, w2c_ref, b2_ref,
                     out_ref):
    # membT_ref : [N,  TE]  bf16  membership counts (node -> hyperedge), this tile
    # invc_ref  : [1,  TE]  f32   1/|e| per hyperedge in the tile
    # aT_ref    : [MH, N ]  bf16  A = W1_blockdiag @ x_cat^T (precomputed in f32)
    # b1T_ref   : [MH, 1 ]  f32   stacked layer-1 bias (column)
    # w2c_ref   : [MH, 1 ]  f32   softmax(alpha)-scaled stacked layer-2 weights
    # b2_ref    : [1]       f32   sum_m softmax(alpha)_m * b2_m  (SMEM scalar)
    # out_ref   : [1,  TE]  f32   sigmoid(score), lane-dense row
    #
    # Single MXU matmul per tile (K = N); everything else is VPU/XLU work.
    hT = jnp.dot(aT_ref[...], membT_ref[...],
                 preferred_element_type=jnp.float32)               # [MH, TE]
    hT = jnp.maximum(hT * invc_ref[...] + b1T_ref[...], 0.0)       # mean-pool + bias + ReLU
    # Final projection has a single output row -> <1% MXU fill; do it as a VPU
    # multiply + sublane reduction in f32 (no bf16 recast of hT).
    sT = jnp.sum(hT * w2c_ref[...], axis=0, keepdims=True) + b2_ref[0]   # [1, TE]
    out_ref[...] = jax.nn.sigmoid(sT)


def _choose_tile(E, N, MH, *, max_te=4096, vmem_budget=32 << 20):
    """Pick a lane tile TE (multiple of 128) and the padded hyperedge count."""
    E_pad128 = _round_up(max(E, 1), 128)
    # Approx VMEM bytes per lane of the per-step working set:
    #   double-buffered streams (memb bf16, invc f32, out f32) + f32 [MH, TE] h
    per_lane = 2 * (2 * N + 4 + 4) + 4 * (MH + 1)
    te = (vmem_budget // max(per_lane, 1)) // 128 * 128
    te = max(128, min(te, max_te, E_pad128))
    # Keep at least two grid steps once E is large, so the "parallel" axis can
    # shard across v7x's two TensorCores and the pipeline can double-buffer.
    # v5e/v6e (single TC) lose nothing: tiles stay >= 512 lanes.
    if E_pad128 >= 1024 and te >= E_pad128:
        te = max(512, (E_pad128 // 2) // 128 * 128)
    E_pad = _round_up(E, te)
    return te, E_pad


def hyperedge_scores_pallas(membT, inv_cnt, aT, b1T, w2c, b2, *, tile_e):
    """membT [N, E_pad] bf16, inv_cnt [1, E_pad] f32, aT [MH, N] bf16,
    b1T [MH, 1] f32, w2c [MH, 1] f32, b2 [1] f32 (SMEM scalar).
    Returns sigmoid scores as a lane-dense row [1, E_pad] f32."""
    N, E_pad = membT.shape
    MH = aT.shape[0]
    TE = tile_e
    assert TE % 128 == 0 and E_pad % TE == 0, (TE, E_pad)
    grid = (E_pad // TE,)

    # Explicit VMEM budget: double-buffered per-step streams + f32 intermediate
    # + replicated (constant index_map) weight buffers.  v5e's default scoped
    # limit is only 16 MiB, so set the limit explicitly; cap at 48 MiB so the
    # same value is safe on v7x's 64 MiB physical VMEM.
    need = 2 * (N * TE * 2 + TE * 4 + TE * 4)       # memb / invc / out tiles (x2 buffers)
    need += MH * TE * 4 + TE * 4                    # f32 hT / sT intermediates
    need += 2 * (MH * N * 2 + 2 * MH * 4)           # replicated weights
    vmem_limit = int(min(max(2 * need, 32 << 20), 48 << 20))

    return pl.pallas_call(
        _selector_kernel,
        out_shape=jax.ShapeDtypeStruct((1, E_pad), jnp.float32),
        grid=grid,
        in_specs=[
            pl.BlockSpec((N, TE), lambda i: (0, i)),          # membership tile (per-step stream)
            pl.BlockSpec((1, TE), lambda i: (0, i)),          # 1/count tile
            pl.BlockSpec((MH, N), lambda i: (0, 0)),          # A (replicated, tiny)
            pl.BlockSpec((MH, 1), lambda i: (0, 0)),          # b1 column (replicated)
            pl.BlockSpec((MH, 1), lambda i: (0, 0)),          # w2 column (replicated)
            pl.BlockSpec(memory_space=pltpu.MemorySpace.SMEM),  # fused scalar bias
        ],
        out_specs=pl.BlockSpec((1, TE), lambda i: (0, i)),
        compiler_params=pltpu.CompilerParams(
            dimension_semantics=("parallel",),
            vmem_limit_bytes=vmem_limit),
    )(membT, inv_cnt, aT, b1T, w2c, b2)


# ----------------------------------------------------------------------------
# Module-level wrapper (mirrors AttentionHyperedgeSelector.forward)
# ----------------------------------------------------------------------------
class AttentionHyperedgeSelectorPallas:
    def __init__(self, input_dims, hidden_dim=64, threshold=0.5, key=None,
                 max_tile_e=4096):
        self.modalities = list(input_dims.keys())
        self.threshold = float(threshold)
        self.hidden_dim = hidden_dim
        self.max_tile_e = max(128, (int(max_tile_e) // 128) * 128)

        key = jax.random.PRNGKey(0) if key is None else key
        self.params = {}
        for m in self.modalities:
            d = input_dims[m]
            key, k1, k2, k3, k4 = jax.random.split(key, 5)
            self.params[m] = {
                # weights stored already transposed (in_dim, out_dim)
                "w1": jax.random.normal(k1, (d, hidden_dim), jnp.float32) * 0.1,
                "b1": jax.random.normal(k2, (1, hidden_dim), jnp.float32) * 0.1,
                "w2": jax.random.normal(k3, (hidden_dim, 1), jnp.float32) * 0.1,
                "b2": jax.random.normal(k4, (1, 1), jnp.float32) * 0.1,
            }
        # matches nn.Parameter(torch.ones(len(modalities)))
        self.alpha = jnp.ones((len(self.modalities),), jnp.float32)
        self._fuse()

    def _fuse(self):
        """Fold softmax(alpha) + all per-modality MLPs into one block-diagonal
        W1, stacked b1, a softmax(alpha)-scaled stacked W2 column and a single
        scalar bias.  NOTE: must be re-invoked if alpha or params change."""
        w = np.asarray(jax.nn.softmax(self.alpha))
        H = self.hidden_dim
        dims = [self.params[m]["w1"].shape[0] for m in self.modalities]
        sum_d, M = sum(dims), len(self.modalities)

        w1T = np.zeros((M * H, sum_d), np.float32)   # block-diagonal, transposed
        b1T = np.zeros((M * H, 1), np.float32)
        w2c = np.zeros((M * H, 1), np.float32)       # pre-scaled by softmax(alpha)
        b2 = np.float32(0.0)
        off = 0
        for i, m in enumerate(self.modalities):
            p, d, wi = self.params[m], dims[i], float(w[i])
            w1T[i * H:(i + 1) * H, off:off + d] = np.asarray(p["w1"]).T
            b1T[i * H:(i + 1) * H, 0] = np.asarray(p["b1"])[0]
            w2c[i * H:(i + 1) * H, 0] = wi * np.asarray(p["w2"])[:, 0]
            b2 = b2 + wi * np.asarray(p["b2"])[0, 0]
            off += d

        self._dims = dims
        self._w1T = jnp.asarray(w1T, jnp.float32)    # f32: used for the A matmul
        self._b1T = jnp.asarray(b1T, jnp.float32)
        self._w2c = jnp.asarray(w2c, jnp.float32)
        self._b2 = jnp.asarray(np.array([b2], np.float32))

    def forward(self, hyperedges, features_dict):
        E = len(hyperedges)
        if E == 0:
            return [], []
        n_nodes = next(iter(features_dict.values())).shape[0]
        MH = self._w1T.shape[0]

        TE, E_pad = _choose_tile(E, n_nodes, MH, max_te=self.max_tile_e)

        # --- host-side membership build (vectorized, bincount) ---------------
        lens = np.fromiter((len(e) for e in hyperedges), dtype=np.int64, count=E)
        if lens.sum() > 0:
            rows = np.concatenate(
                [np.asarray(e, dtype=np.int64).reshape(-1) for e in hyperedges])
            cols = np.repeat(np.arange(E, dtype=np.int64), lens)
            counts = np.bincount(rows * E_pad + cols,
                                 minlength=n_nodes * E_pad).reshape(n_nodes, E_pad)
        else:
            counts = np.zeros((n_nodes, E_pad), np.int64)
        # duplicates accumulate (matches torch fancy-indexing + mean); bf16 is
        # integer-exact only up to 256 per (node, edge) pair.
        assert counts.max() <= 256, "per-(node,edge) multiplicity too large for bf16"
        membT = jnp.asarray(counts.astype(np.float32), jnp.bfloat16)   # [N, E_pad]

        inv_cnt = np.ones((1, E_pad), np.float32)
        # TODO(synk): empty hyperedges give NaN in torch (mean over 0 rows); we
        # clamp the count to 1 instead of propagating NaN.
        inv_cnt[0, :E] = 1.0 / np.maximum(lens, 1).astype(np.float32)

        # --- fuse W1 with the features OUTSIDE the kernel (f32, once) --------
        x_catT = jnp.concatenate(
            [features_dict[m].astype(jnp.float32).T for m in self.modalities],
            axis=0)                                             # [sum_d, N]
        aT = jnp.dot(self._w1T, x_catT).astype(jnp.bfloat16)    # [M*H, N]

        scores_row = hyperedge_scores_pallas(
            membT, jnp.asarray(inv_cnt), aT,
            self._b1T, self._w2c, self._b2, tile_e=TE)

        scores = np.asarray(jax.block_until_ready(scores_row))[0, :E].tolist()
        selected = [e for e, s in zip(hyperedges, scores) if s > self.threshold]
        return selected, scores


# ----------------------------------------------------------------------------
# Vectorized f64 numpy reference (mirrors the PyTorch per-edge loop semantics)
# ----------------------------------------------------------------------------
def reference_scores(module, hyperedges, features_dict):
    w = np.asarray(jax.nn.softmax(module.alpha), np.float64)
    scores = np.zeros(len(hyperedges), np.float64)
    for i, m in enumerate(module.modalities):
        p = module.params[m]
        feats = np.asarray(features_dict[m], np.float64)
        w1 = np.asarray(p["w1"], np.float64)
        b1 = np.asarray(p["b1"], np.float64)[0]
        w2 = np.asarray(p["w2"], np.float64)[:, 0]
        b2 = np.asarray(p["b2"], np.float64)[0, 0]
        pooled = np.stack([feats[np.asarray(e, np.int64)].mean(axis=0)
                           for e in hyperedges])                # [E, d_m]
        h = np.maximum(pooled @ w1 + b1, 0.0)                   # [E, H]
        scores += w[i] * (h @ w2 + b2)                          # [E]
    return 1.0 / (1.0 + np.exp(-scores))


def _check(module, hyperedges, feats):
    selected, scores = module.forward(hyperedges, feats)
    ref = reference_scores(module, hyperedges, feats)
    # kernel feeds bf16 MXU operands -> compare in sigmoid space with abs tol
    np.testing.assert_allclose(np.asarray(scores), ref, rtol=0.0, atol=2e-2)
    # selection must agree wherever the reference is clearly off-threshold
    for s_k, s_r in zip(scores, ref):
        if abs(s_r - module.threshold) > 2e-2:
            assert (s_k > module.threshold) == (s_r > module.threshold)
    return selected, scores


# ----------------------------------------------------------------------------
if __name__ == "__main__":
    key = jax.random.PRNGKey(0)
    k_img, k_txt, k_img2, k_txt2 = jax.random.split(key, 4)

    input_dims = {"image": 32, "text": 64}
    module = AttentionHyperedgeSelectorPallas(input_dims, hidden_dim=32,
                                              threshold=0.5)

    # ---- test 1: small hand-written hyperedges (single-tile grid) -----------
    N1 = 16
    feats1 = {
        "image": jax.random.normal(k_img, (N1, input_dims["image"]), jnp.float32),
        "text": jax.random.normal(k_txt, (N1, input_dims["text"]), jnp.float32),
    }
    hyperedges1 = [
        [0, 1, 2], [3, 4], [5, 6, 7, 8], [1, 9],
        [10, 11, 12], [2, 13, 14], [15, 0], [4, 7, 11, 13],
    ]
    _check(module, hyperedges1, feats1)

    # ---- test 2: larger E / N (multi-step grid, lane padding, megacore) -----
    N2 = 64
    feats2 = {
        "image": jax.random.normal(k_img2, (N2, input_dims["image"]), jnp.float32),
        "text": jax.random.normal(k_txt2, (N2, input_dims["text"]), jnp.float32),
    }
    rng = np.random.default_rng(0)
    hyperedges2 = [rng.choice(N2, size=int(sz), replace=False).tolist()
                   for sz in rng.integers(2, 7, size=1500)]
    _check(module, hyperedges2, feats2)

    print("KERNEL_OK")
</pallas_src>

<mosaic_0001>
module attributes {stable_mosaic.version = 11 : i64} {
  func.func @_selector_kernel(%arg0: i32, %arg1: memref<16x128xbf16, #tpu.memory_space<vmem>>, %arg2: memref<1x128xf32, #tpu.memory_space<vmem>>, %arg3: memref<64x16xbf16, #tpu.memory_space<vmem>>, %arg4: memref<64x1xf32, #tpu.memory_space<vmem>>, %arg5: memref<64x1xf32, #tpu.memory_space<vmem>>, %arg6: memref<1xf32, #tpu.memory_space<smem>>, %arg7: memref<1x128xf32, #tpu.memory_space<vmem>>) attributes {dimension_semantics = [#tpu.dimension_semantics<parallel>], iteration_bounds = array<i64: 1>, scalar_prefetch = 0 : i64, scratch_operands = 0 : i64, tpu.core_type = #tpu.core_type<tc>, window_params = [{transform_indices = @transform_0, window_bounds = array<i64: 16, 128>}, {transform_indices = @transform_1, window_bounds = array<i64: 1, 128>}, {pipeline_mode = #tpu.pipeline_mode<synchronous>, transform_indices = @transform_2, window_bounds = array<i64: 64, 16>}, {pipeline_mode = #tpu.pipeline_mode<synchronous>, transform_indices = @transform_3, window_bounds = array<i64: 64, 1>}, {pipeline_mode = #tpu.pipeline_mode<synchronous>, transform_indices = @transform_4, window_bounds = array<i64: 64, 1>}, {transform_indices = @transform_5, window_bounds = array<i64: 1>}, {transform_indices = @transform_6, window_bounds = array<i64: 1, 128>}]} {
    %c0 = arith.constant 0 : index
    %c0_0 = arith.constant 0 : index
    %0 = vector.load %arg3[%c0, %c0_0] : memref<64x16xbf16, #tpu.memory_space<vmem>>, vector<64x16xbf16>
    %c0_1 = arith.constant 0 : index
    %c0_2 = arith.constant 0 : index
    %1 = vector.load %arg1[%c0_1, %c0_2] : memref<16x128xbf16, #tpu.memory_space<vmem>>, vector<16x128xbf16>
    %cst = arith.constant dense<0.000000e+00> : vector<64x128xf32>
    %2 = tpu.matmul %0, %1, %cst {dimension_numbers = #tpu.dot_dimension_numbers<[1], [0], [0], [1], [0, 0, 1, 1], [], []>} : vector<64x16xbf16>, vector<16x128xbf16>, vector<64x128xf32> -> vector<64x128xf32>
    %c0_3 = arith.constant 0 : index
    %c0_4 = arith.constant 0 : index
    %3 = vector.load %arg2[%c0_3, %c0_4] : memref<1x128xf32, #tpu.memory_space<vmem>>, vector<1x128xf32>
    %4 = vector.broadcast %3 : vector<1x128xf32> to vector<64x128xf32>
    %5 = arith.mulf %2, %4 : vector<64x128xf32>
    %c0_5 = arith.constant 0 : index
    %c0_6 = arith.constant 0 : index
    %6 = vector.load %arg4[%c0_5, %c0_6] : memref<64x1xf32, #tpu.memory_space<vmem>>, vector<64x1xf32>
    %7 = vector.broadcast %6 : vector<64x1xf32> to vector<64x128xf32>
    %8 = arith.addf %5, %7 : vector<64x128xf32>
    %cst_7 = arith.constant 0.000000e+00 : f32
    %9 = vector.broadcast %cst_7 : f32 to vector<64x128xf32>
    %10 = arith.maximumf %8, %9 : vector<64x128xf32>
    %c0_8 = arith.constant 0 : index
    %c0_9 = arith.constant 0 : index
    %11 = vector.load %arg5[%c0_8, %c0_9] : memref<64x1xf32, #tpu.memory_space<vmem>>, vector<64x1xf32>
    %12 = vector.broadcast %11 : vector<64x1xf32> to vector<64x128xf32>
    %13 = arith.mulf %10, %12 : vector<64x128xf32>
    %cst_10 = arith.constant dense<0.000000e+00> : vector<128xf32>
    %14 = vector.multi_reduction <add>, %13, %cst_10 [0] : vector<64x128xf32> to vector<128xf32>
    %15 = vector.shape_cast %14 : vector<128xf32> to vector<1x128xf32>
    %c0_11 = arith.constant 0 : index
    %16 = memref.load %arg6[%c0_11] : memref<1xf32, #tpu.memory_space<smem>>
    %17 = vector.broadcast %16 : f32 to vector<1x128xf32>
    %18 = arith.addf %15, %17 : vector<1x128xf32>
    %19 = arith.negf %18 : vector<1x128xf32>
    %20 = math.exp %19 : vector<1x128xf32>
    %cst_12 = arith.constant 1.000000e+00 : f32
    %21 = vector.broadcast %cst_12 : f32 to vector<1x128xf32>
    %22 = arith.addf %21, %20 : vector<1x128xf32>
    %23 = arith.divf %21, %22 : vector<1x128xf32>
    %c0_13 = arith.constant 0 : index
    %c0_14 = arith.constant 0 : index
    %24 = vector.load %arg7[%c0_13, %c0_14] : memref<1x128xf32, #tpu.memory_space<vmem>>, vector<1x128xf32>
    tpu.vector_store %arg7[%c0_13, %c0_14], %23 {strides = array<i32>} : memref<1x128xf32, #tpu.memory_space<vmem>>, vector<1x128xf32>,
    return
  }
  func.func @transform_0(%arg0: i32) -> (i32, i32) {
    %c0_i32 = arith.constant 0 : i32
    %c0_i32_0 = arith.constant 0 : i32
    return %c0_i32, %arg0 : i32, i32
  }
  func.func @transform_1(%arg0: i32) -> (i32, i32) {
    %c0_i32 = arith.constant 0 : i32
    %c0_i32_0 = arith.constant 0 : i32
    return %c0_i32, %arg0 : i32, i32
  }
  func.func @transform_2(%arg0: i32) -> (i32, i32) {
    %c0_i32 = arith.constant 0 : i32
    %c0_i32_0 = arith.constant 0 : i32
    %c0_i32_1 = arith.constant 0 : i32
    return %c0_i32, %c0_i32_0 : i32, i32
  }
  func.func @transform_3(%arg0: i32) -> (i32, i32) {
    %c0_i32 = arith.constant 0 : i32
    %c0_i32_0 = arith.constant 0 : i32
    %c0_i32_1 = arith.constant 0 : i32
    return %c0_i32, %c0_i32_0 : i32, i32
  }
  func.func @transform_4(%arg0: i32) -> (i32, i32) {
    %c0_i32 = arith.constant 0 : i32
    %c0_i32_0 = arith.constant 0 : i32
    %c0_i32_1 = arith.constant 0 : i32
    return %c0_i32, %c0_i32_0 : i32, i32
  }
  func.func @transform_5(%arg0: i32) -> i32 {
    %c0_i32 = arith.constant 0 : i32
    %c0_i32_0 = arith.constant 0 : i32
    return %c0_i32 : i32
  }
  func.func @transform_6(%arg0: i32) -> (i32, i32) {
    %c0_i32 = arith.constant 0 : i32
    %c0_i32_0 = arith.constant 0 : i32
    return %c0_i32, %arg0 : i32, i32
  }
}

</mosaic_0001>

<llo_original>
// kernel: tpu_custom_call.1
$region0: #{tpu_custom_call.1}
  #allocation0 [shape = 'u32[]', space=smem, size = 0x4, offset = 0x4, fixed_abs, tag = 'smem constant byte address 0x4 - core index']
  #allocation1 [shape = 'u32[144,128]{1,0:T(1,128)}', space=vmem, size = 0x12000, scoped, tag = 'internal scratch']
  #allocation2 [shape = 'f32[1]{0:T(128)S(6)}', space=smem, size = 0x200, scoped, tag = 'scoped memory for tpu_custom_call.1']
  %s0 = inlined_call_operand.vmem [shape: bf16[16,128], index: 0, kind: input, shape index: {}]
  %s1 = inlined_call_operand.vmem [shape: f32[1,128], index: 1, kind: input, shape index: {}]
  %s2 = inlined_call_operand.vmem [shape: bf16[64,16], index: 2, kind: input, shape index: {}]
  %s3 = inlined_call_operand.vmem [shape: f32[64,1], index: 3, kind: input, shape index: {}]
  %s4 = inlined_call_operand.vmem [shape: f32[64,1], index: 4, kind: input, shape index: {}]
  %s5 = inlined_call_operand.<no memory space> [shape: f32[1], index: 5, kind: input, shape index: {}]
  %s6 = inlined_call_operand.hbm [shape: f32[1,128], index: 6, kind: output, shape index: {}]
  %s7 = sld [smem:[#allocation0]]
  $region34: #{tpu_custom_call.1} parent=0
    _
  %s9 = ssub.s32 1, %s7
  %s10 = scalar_select 0, %s9, %s7
  %11 = sst [smem:[#allocation2]] %s5
  $region1: #{tpu_custom_call.1} parent=0
    #allocation3 [shape = 'u8[512]{0}', space=vmem, size = 0x400, scoped, tag = 'output window, operand 0, single buffered']
    #allocation4 [shape = 's32[1]{0}', space=sflag, size = 0x4, scoped, tag = 'scoped memory for tpu_custom_call.1']
    %12 = vsyncpa [#allocation4], 0
    // Predicated region
    $region2: #{tpu_custom_call.1} parent=1 // pred_check
      _
    $region3: #{tpu_custom_call.1} parent=1 // pred_check_branch
      %14 = sbr.rel (0) target = $region5
    $region4: #{tpu_custom_call.1} parent=1 // pred_region
      _
    $region5: #{tpu_custom_call.1} parent=1 // pred_fallthru
      _
    // Predicated region
    $region6: #{tpu_custom_call.1} parent=1 // pred_check
      _
    $region7: #{tpu_custom_call.1} parent=1 // pred_check_branch
      %16 = sbr.rel (0) target = $region9
    $region8: #{tpu_custom_call.1} parent=1 // pred_region
      _
    $region9: #{tpu_custom_call.1} parent=1 // pred_fallthru
      _
    // Predicated region
    $region10: #{tpu_custom_call.1} parent=1 // pred_check
      _
    $region11: #{tpu_custom_call.1} parent=1 // pred_check_branch
      %18 = sbr.rel (0) target = $region13
    $region12: #{tpu_custom_call.1} parent=1 // pred_region
      _
    $region13: #{tpu_custom_call.1} parent=1 // pred_fallthru
      _
    // Predicated region
    $region14: #{tpu_custom_call.1} parent=1 // pred_check
      _
    $region15: #{tpu_custom_call.1} parent=1 // pred_check_branch
      %20 = sbr.rel (0) target = $region17
    $region16: #{tpu_custom_call.1} parent=1 // pred_region
      _
    $region17: #{tpu_custom_call.1} parent=1 // pred_fallthru
      _
    // Predicated region
    $region18: #{tpu_custom_call.1} parent=1 // pred_check
      _
    $region19: #{tpu_custom_call.1} parent=1 // pred_check_branch
      %22 = sbr.rel (0) target = $region21
    $region20: #{tpu_custom_call.1} parent=1 // pred_region
      _
    $region21: #{tpu_custom_call.1} parent=1 // pred_fallthru
      _
    // Predicated region
    $region22: #{tpu_custom_call.1} parent=1 // pred_check
      _
    $region23: #{tpu_custom_call.1} parent=1 // pred_check_branch
      %24 = sbr.rel (0) target = $region25
    $region24: #{tpu_custom_call.1} parent=1 // pred_region
      _
    $region25: #{tpu_custom_call.1} parent=1 // pred_fallthru
      _
    %v26 = vld [vmem:[%s2] sm:$0xf]
    %v27 = vld [vmem:[%s2 + $0x4] sm:$0xf]
    %v28 = vld [vmem:[%s2 + $0x8] sm:$0xf]
    %v29 = vld [vmem:[%s2 + $0xc] sm:$0xf]
    %v30 = vld [vmem:[%s2 + $0x10] sm:$0xf]
    %v31 = vld [vmem:[%s2 + $0x14] sm:$0xf]
    %v32 = vld [vmem:[%s2 + $0x18] sm:$0xf]
    %v33 = vld [vmem:[%s2 + $0x1c] sm:$0xf]
    %v34 = vld [vmem:[%s0] sm:$0xf]
    %v35 = vld [vmem:[%s0 + $0x4] sm:$0xf]
    %v44 = vunpack.c.l.b16 %v26
    %v45 = vunpack.c.l.b16 %v27
    %v46 = vunpack.c.l.b16 %v28
    %v47 = vunpack.c.l.b16 %v29
    %v48 = vunpack.c.l.b16 %v30
    %v49 = vunpack.c.l.b16 %v31
    %v50 = vunpack.c.l.b16 %v32
    %v51 = vunpack.c.l.b16 %v33
    %v52 = vpack.c.b16 %v45, %v44
    %v53 = vpack.c.b16 %v47, %v46
    %v54 = vpack.c.b16 %v49, %v48
    %v55 = vpack.c.b16 %v51, %v50
    %v58 = vunpack.c.l.b16 %v34
    %v59 = vunpack.c.l.b16 %v35
    %v60 = vpack.c.b16 %v59, %v58
    %vm62 = vcmask 130048
    %v64 = vsel %vm62, %v52, 0
    %v67 = vsel %vm62, %v53, 0
    %v70 = vsel %vm62, %v54, 0
    %v73 = vsel %vm62, %v55, 0
    %75 = vmatprep.subr.bf16.mxu0 0
    %76 = vmatpush1.bf16.msra.mxu0 %v60
    %77 = vmatprep.subr.bf16.mxu0 0
    %78 = vmatpush1.bf16.msra.mxu0 0
    %79 = vmatprep.subr.bf16.mxu0 0
    %80 = vmatpush1.bf16.msra.mxu0 0
    %81 = vmatprep.subr.bf16.mxu0 0
    %82 = vmatpush1.bf16.msra.mxu0 0
    %83 = vmatprep.subr.bf16.mxu0 0
    %84 = vmatpush1.bf16.msra.mxu0 0
    %85 = vmatprep.subr.bf16.mxu0 0
    %86 = vmatpush1.bf16.msra.mxu0 0
    %87 = vmatprep.subr.bf16.mxu0 0
    %88 = vmatpush1.bf16.msra.mxu0 0
    %89 = vmatprep.subr.bf16.mxu0 0
    %90 = vmatpush1.bf16.msra.mxu0 0
    %91 = vmatprep.subr.bf16.mxu0 0
    %92 = vmatpush1.bf16.msra.mxu0 0
    %93 = vmatprep.subr.bf16.mxu0 0
    %94 = vmatpush1.bf16.msra.mxu0 0
    %95 = vmatprep.subr.bf16.mxu0 0
    %96 = vmatpush1.bf16.msra.mxu0 0
    %97 = vmatprep.subr.bf16.mxu0 0
    %98 = vmatpush1.bf16.msra.mxu0 0
    %99 = vmatprep.subr.bf16.mxu0 0
    %100 = vmatpush1.bf16.msra.mxu0 0
    %101 = vmatprep.subr.bf16.mxu0 0
    %102 = vmatpush1.bf16.msra.mxu0 0
    %103 = vmatprep.subr.bf16.mxu0 0
    %104 = vmatpush1.bf16.msra.mxu0 0
    %105 = vmatprep.subr.bf16.mxu0 0
    %106 = vmatpush1.bf16.msra.mxu0 0
    %107 = vmatprep.mubr.bf16.mxu0 0
    %108 = vmatmul.mubr.bf16.gmra.mrb[0].mxu0 %v64
    %v109 = vpop.f32.mrb[0].mxu0
    %v110 = vadd.f32 0.0, %v109
    %v111 = vpop.f32.mrb[0].mxu0
    %v112 = vpop.f32.mrb[0].mxu0
    %v113 = vadd.f32 0.0, %v112
    %v114 = vpop.f32.mrb[0].mxu0
    %115 = vmatprep.mubr.bf16.mxu0 0
    %116 = vmatmul.mubr.bf16.gmra.mrb[0].mxu0 %v67
    %v117 = vpop.f32.mrb[0].mxu0
    %v118 = vadd.f32 0.0, %v117
    %v119 = vpop.f32.mrb[0].mxu0
    %v120 = vpop.f32.mrb[0].mxu0
    %v121 = vadd.f32 0.0, %v120
    %v122 = vpop.f32.mrb[0].mxu0
    %123 = vmatprep.mubr.bf16.mxu0 0
    %124 = vmatmul.mubr.bf16.gmra.mrb[0].mxu0 %v70
    %v125 = vpop.f32.mrb[0].mxu0
    %v126 = vadd.f32 0.0, %v125
    %v127 = vpop.f32.mrb[0].mxu0
    %v128 = vpop.f32.mrb[0].mxu0
    %v129 = vadd.f32 0.0, %v128
    %v130 = vpop.f32.mrb[0].mxu0
    %131 = vmatprep.mubr.bf16.mxu0 0
    %132 = vmatmul.mubr.bf16.gmra.mrb[0].mxu0 %v73
    %v133 = vpop.f32.mrb[0].mxu0
    %v134 = vadd.f32 0.0, %v133
    %v135 = vpop.f32.mrb[0].mxu0
    %v136 = vpop.f32.mrb[0].mxu0
    %v137 = vadd.f32 0.0, %v136
    %v138 = vpop.f32.mrb[0].mxu0
    %139 = vdwg.mxu0
    %v140 = vld [vmem:[%s1] sm:$0x1]
    %v142 = vlaneseq
    %v143 = vshrl.u32 %v142, 7
    %v144 = vsub.s32 0, %v143
    %v145 = vrot.slane %v140, %v144
    %v147 = vmul.f32 %v110, %v145
    %v148 = vmul.f32 %v113, %v145
    %v149 = vmul.f32 %v118, %v145
    %v150 = vmul.f32 %v121, %v145
    %v151 = vmul.f32 %v126, %v145
    %v152 = vmul.f32 %v129, %v145
    %v153 = vmul.f32 %v134, %v145
    %v154 = vmul.f32 %v137, %v145
    %v155 = vld [vmem:[%s3] sm:$0xff]
    %v156 = vld [vmem:[%s3 + $0x8] sm:$0xff]
    %v157 = vld [vmem:[%s3 + $0x10] sm:$0xff]
    %v158 = vld [vmem:[%s3 + $0x18] sm:$0xff]
    %v159 = vld [vmem:[%s3 + $0x20] sm:$0xff]
    %v160 = vld [vmem:[%s3 + $0x28] sm:$0xff]
    %v161 = vld [vmem:[%s3 + $0x30] sm:$0xff]
    %v162 = vld [vmem:[%s3 + $0x38] sm:$0xff]
    %164 = vset.pattern.permute.xlu0 0
    %165 = vperm.xlu0 %164, %v155
    %v166 = vpop.permute.xlu0 %165
    %169 = vset.pattern.permute.xlu0 0
    %170 = vperm.xlu0 %169, %v156
    %v171 = vpop.permute.xlu0 %170
    %174 = vset.pattern.permute.xlu0 0
    %175 = vperm.xlu0 %174, %v157
    %v176 = vpop.permute.xlu0 %175
    %179 = vset.pattern.permute.xlu0 0
    %180 = vperm.xlu0 %179, %v158
    %v181 = vpop.permute.xlu0 %180
    %184 = vset.pattern.permute.xlu0 0
    %185 = vperm.xlu0 %184, %v159
    %v186 = vpop.permute.xlu0 %185
    %189 = vset.pattern.permute.xlu0 0
    %190 = vperm.xlu0 %189, %v160
    %v191 = vpop.permute.xlu0 %190
    %194 = vset.pattern.permute.xlu0 0
    %195 = vperm.xlu0 %194, %v161
    %v196 = vpop.permute.xlu0 %195
    %199 = vset.pattern.permute.xlu0 0
    %200 = vperm.xlu0 %199, %v162
    %v201 = vpop.permute.xlu0 %200
    %v203 = vadd.f32 %v147, %v166
    %v204 = vadd.f32 %v148, %v171
    %v205 = vadd.f32 %v149, %v176
    %v206 = vadd.f32 %v150, %v181
    %v207 = vadd.f32 %v151, %v186
    %v208 = vadd.f32 %v152, %v191
    %v209 = vadd.f32 %v153, %v196
    %v210 = vadd.f32 %v154, %v201
    %v211 = vmax.f32 %v203, 0.0
    %v212 = vmax.f32 %v204, 0.0
    %v213 = vmax.f32 %v205, 0.0
    %v214 = vmax.f32 %v206, 0.0
    %v215 = vmax.f32 %v207, 0.0
    %v216 = vmax.f32 %v208, 0.0
    %v217 = vmax.f32 %v209, 0.0
    %v218 = vmax.f32 %v210, 0.0
    %v219 = vld [vmem:[%s4] sm:$0xff]
    %v220 = vld [vmem:[%s4 + $0x8] sm:$0xff]
    %v221 = vld [vmem:[%s4 + $0x10] sm:$0xff]
    %v222 = vld [vmem:[%s4 + $0x18] sm:$0xff]
    %v223 = vld [vmem:[%s4 + $0x20] sm:$0xff]
    %v224 = vld [vmem:[%s4 + $0x28] sm:$0xff]
    %v225 = vld [vmem:[%s4 + $0x30] sm:$0xff]
    %v226 = vld [vmem:[%s4 + $0x38] sm:$0xff]
    %228 = vset.pattern.permute.xlu0 0
    %229 = vperm.xlu0 %228, %v219
    %v230 = vpop.permute.xlu0 %229
    %233 = vset.pattern.permute.xlu0 0
    %234 = vperm.xlu0 %233, %v220
    %v235 = vpop.permute.xlu0 %234
    %238 = vset.pattern.permute.xlu0 0
    %239 = vperm.xlu0 %238, %v221
    %v240 = vpop.permute.xlu0 %239
    %243 = vset.pattern.permute.xlu0 0
    %244 = vperm.xlu0 %243, %v222
    %v245 = vpop.permute.xlu0 %244
    %248 = vset.pattern.permute.xlu0 0
    %249 = vperm.xlu0 %248, %v223
    %v250 = vpop.permute.xlu0 %249
    %253 = vset.pattern.permute.xlu0 0
    %254 = vperm.xlu0 %253, %v224
    %v255 = vpop.permute.xlu0 %254
    %258 = vset.pattern.permute.xlu0 0
    %259 = vperm.xlu0 %258, %v225
    %v260 = vpop.permute.xlu0 %259
    %263 = vset.pattern.permute.xlu0 0
    %264 = vperm.xlu0 %263, %v226
    %v265 = vpop.permute.xlu0 %264
    %v267 = vmul.f32 %v211, %v230
    %v268 = vmul.f32 %v212, %v235
    %v269 = vmul.f32 %v213, %v240
    %v270 = vmul.f32 %v214, %v245
    %v271 = vmul.f32 %v215, %v250
    %v272 = vmul.f32 %v216, %v255
    %v273 = vmul.f32 %v217, %v260
    %v274 = vmul.f32 %v218, %v265
    %v275 = vadd.f32 %v267, %v268
    %v276 = vadd.f32 %v275, %v269
    %v277 = vadd.f32 %v276, %v270
    %v278 = vadd.f32 %v277, %v271
    %v279 = vadd.f32 %v278, %v272
    %v280 = vadd.f32 %v279, %v273
    %v281 = vadd.f32 %v280, %v274
    %v282 = vrot.slane %v281, 4
    %v283 = vadd.f32 %v281, %v282
    %v284 = vrot.slane %v283, 2
    %v285 = vadd.f32 %v283, %v284
    %v286 = vrot.slane %v285, 1
    %v287 = vadd.f32 %v285, %v286
    %s288 = sld [smem:[#allocation2]]
    %v289 = vstv %s288
    %v290 = vadd.f32 %v287, %v289
    %v291 = vxor.u32 %v290, 2147483648
    %v292 = vmul.f32 %v291, 1.442695
    %v293 = vpow.pop %v292
    %v294 = vadd.f32 %v293, 1.0
    %v295 = vrcp.pop %v294
    %v296 = vmul.f32 1.0, %v295
    %297 = vst [vmem:[#allocation3] sm:$0x1] %v296
    // Predicated region
    $region26: #{tpu_custom_call.1} parent=1 // pred_check
      _
    $region27: #{tpu_custom_call.1} parent=1 // pred_check_branch
      %299 = sbr.rel (0) target = $region29
    $region28: #{tpu_custom_call.1} parent=1 // pred_region
      %s301 = ssub.s32 16, 16
      %302 = vsyncadd [#allocation4], %s301
      %s304 = sshll.u32 [#allocation3], 4
      %s305 = int_to_ptr.vmem [resolvable:$true] %s304
      %307 = dma.vmem_to_hbm [thread:$0]  %s305, 16, %s6, [#allocation4]
    $region29: #{tpu_custom_call.1} parent=1 // pred_fallthru
      _
    // Predicated region
    $region30: #{tpu_custom_call.1} parent=1 // pred_check
      _
    $region31: #{tpu_custom_call.1} parent=1 // pred_check_branch
      %309 = sbr.rel (0) target = $region33
    $region32: #{tpu_custom_call.1} parent=1 // pred_region
      %310 = dma.done [#allocation4], 16
    $region33: #{tpu_custom_call.1} parent=1 // pred_fallthru
      _
    %311 = vsyncpa [#allocation4], 1

</llo_original>
